<compile_context>
chip_gen: v7x
topology: tpu7x:2x2x1
jax: 0.10.0
libtpu: 0.0.40
codegen_flags: <defaults>
</compile_context>

<pallas_src>
import functools

import jax
import jax.numpy as jnp
from jax.experimental import pallas as pl
from jax.experimental.pallas import tpu as pltpu


# ---------------------------------------------------------------------------
# Fused Pallas kernel: layer-0 LSTM recurrence + final Linear
# ---------------------------------------------------------------------------
def _fused_lstm_linear_kernel(x_ref, w_ih_ref, w_hh_ref, b_ref, wl_ref, bl_ref,
                              o_ref, *, hidden_size, seq_len, batch):
    """x_ref   : (T*Bp, I)  time-major, batch padded to a full sublane tile
    w_ih_ref: (I, 4H)    input->gate weights (gate order i, f, g, o)
    w_hh_ref: (H, 4H)    hidden->gate weights
    b_ref   : (1, 4H)    b_ih + b_hh
    wl_ref  : (1, H)     final Linear weight (PyTorch nn.Linear layout)
    bl_ref  : (1, 1)     final Linear bias
    o_ref   : (Bp, 128)  per-batch result broadcast across lanes (full-tile store)
    """
    H = hidden_size
    T = seq_len
    Bp = batch

    w_hh = w_hh_ref[...]

    # Hoist the input projection out of the serial recurrence: one
    # (T*Bp, I) x (I, 4H) matmul + one bias broadcast instead of T tiny
    # matmuls and T bias broadcasts inside the time loop.
    x_proj = (jnp.dot(x_ref[...], w_ih_ref[...],
                      preferred_element_type=jnp.float32) + b_ref[...])

    h = jnp.zeros((Bp, H), jnp.float32)   # zero initial state, as in forward()
    c = jnp.zeros((Bp, H), jnp.float32)

    # T is small and static -> full unroll: the scheduler can overlap step
    # t+1's h@W_hh MXU push with step t's gate VPU/EUP work.
    for t in range(T):
        gates = x_proj[t * Bp:(t + 1) * Bp] + jnp.dot(
            h, w_hh, preferred_element_type=jnp.float32)         # (Bp, 4H)
        sg = jax.nn.sigmoid(gates)        # one full-width EUP pass covers i, f, o
        tg = jnp.tanh(gates)              # one full-width EUP pass covers g
        i_g = sg[:, 0 * H:1 * H]
        f_g = sg[:, 1 * H:2 * H]
        g_g = tg[:, 2 * H:3 * H]
        o_g = sg[:, 3 * H:4 * H]
        c = f_g * c + i_g * g_g
        h = o_g * jnp.tanh(c)

    # Fused final Linear as a VPU multiply + lane reduction (no extra
    # pallas_call launch, no 1-lane sliver MXU matmul).
    y = jnp.sum(h * wl_ref[...], axis=-1, keepdims=True) + bl_ref[...]  # (Bp, 1)
    o_ref[...] = jnp.broadcast_to(y, (Bp, 128))   # lane-dense full-tile store


# ---------------------------------------------------------------------------
# Forward pass (matches RegressorClass.forward)
# ---------------------------------------------------------------------------
def regressor_forward(params, x, hidden_size, num_layers):
    """Returns Linear(h_n[0]).flatten().

    Only the first LSTM layer's final hidden state reaches the output, so the
    remaining stacked layers (dead compute in the reference module) are
    skipped entirely; inter-layer dropout is a no-op at inference.
    """
    del num_layers  # layers >= 1 never affect the returned value
    B, T, _ = x.shape
    Bp = ((B + 7) // 8) * 8        # pad batch to a full 8-sublane tile

    w_ih, w_hh, b = params["lstm"][0]

    # Time-major + batch-padded layout so every per-step access inside the
    # kernel is a full-tile (Bp, *) load/store (no middle-dim-1 masked ops).
    xt = jnp.transpose(x, (1, 0, 2))                       # (T, B, I)
    xt = jnp.pad(xt, ((0, 0), (0, Bp - B), (0, 0)))        # (T, Bp, I)
    x2d = xt.reshape(T * Bp, xt.shape[-1])                 # (T*Bp, I)

    vmem = pl.BlockSpec(memory_space=pltpu.MemorySpace.VMEM)
    out = pl.pallas_call(
        functools.partial(_fused_lstm_linear_kernel,
                          hidden_size=hidden_size, seq_len=T, batch=Bp),
        out_shape=jax.ShapeDtypeStruct((Bp, 128), jnp.float32),
        in_specs=[vmem] * 6,
        out_specs=vmem,
    )(x2d, w_ih, w_hh, b, params["l1_w"], params["l1_b"])
    # TODO(synk): if T/H ever scale up, add a time-chunk grid ("arbitrary"
    # semantics) with h/c carried in VMEM scratch so the whole sequence never
    # has to be VMEM-resident (v7x has only 64 MiB of VMEM), and a "parallel"
    # batch axis so v7x's second TensorCore is used for large B.
    return out[:B, 0]                                      # == .flatten()


# ---------------------------------------------------------------------------
# Parameter construction (mirrors nn.LSTM / nn.Linear shapes, deterministic)
# ---------------------------------------------------------------------------
def init_params(key, input_size, hidden_size, num_layers):
    k = 1.0 / jnp.sqrt(hidden_size)
    params = {"lstm": []}
    for layer in range(num_layers):
        in_sz = input_size if layer == 0 else hidden_size
        key, k1, k2, k3, k4 = jax.random.split(key, 5)
        # PyTorch stores (4H, in); pre-transposed to (in, 4H) for x @ W.
        # Column order preserves PyTorch's gate layout (i, f, g, o).
        w_ih = jax.random.uniform(k1, (in_sz, 4 * hidden_size), jnp.float32, -k, k)
        w_hh = jax.random.uniform(k2, (hidden_size, 4 * hidden_size), jnp.float32, -k, k)
        b_ih = jax.random.uniform(k3, (4 * hidden_size,), jnp.float32, -k, k)
        b_hh = jax.random.uniform(k4, (4 * hidden_size,), jnp.float32, -k, k)
        params["lstm"].append((w_ih, w_hh, (b_ih + b_hh).reshape(1, -1)))
    key, k1, k2 = jax.random.split(key, 3)
    kl = 1.0 / jnp.sqrt(hidden_size)
    # nn.Linear(hidden, 1): weight (1, H), bias (1,) -> stored as (1, H), (1, 1)
    params["l1_w"] = jax.random.uniform(k1, (1, hidden_size), jnp.float32, -kl, kl)
    params["l1_b"] = jax.random.uniform(k2, (1, 1), jnp.float32, -kl, kl)
    return params


# ---------------------------------------------------------------------------
if __name__ == "__main__":
    # Small shapes consistent with the module: (batch, seq, input_size).
    batch, seq, input_size = 4, 8, 16
    hidden_size, num_layers = 32, 2
    dropout_rate = 0.1  # inactive at inference (eval mode)

    key = jax.random.PRNGKey(0)
    key_p, key_x = jax.random.split(key)
    params = init_params(key_p, input_size, hidden_size, num_layers)
    x = jax.random.normal(key_x, (batch, seq, input_size), jnp.float32)

    forward = jax.jit(regressor_forward, static_argnums=(2, 3))
    out = forward(params, x, hidden_size, num_layers)
    out = jax.block_until_ready(out)
    assert out.shape == (batch,), out.shape
    print("KERNEL_OK")
</pallas_src>

<mosaic_0001>
module attributes {stable_mosaic.version = 11 : i64} {
  func.func @_fused_lstm_linear_kernel(%arg0: memref<64x16xf32, #tpu.memory_space<vmem>>, %arg1: memref<16x128xf32, #tpu.memory_space<vmem>>, %arg2: memref<32x128xf32, #tpu.memory_space<vmem>>, %arg3: memref<1x128xf32, #tpu.memory_space<vmem>>, %arg4: memref<1x32xf32, #tpu.memory_space<vmem>>, %arg5: memref<1x1xf32, #tpu.memory_space<vmem>>, %arg6: memref<8x128xf32, #tpu.memory_space<vmem>>) attributes {dimension_semantics = [], scalar_prefetch = 0 : i64, scratch_operands = 0 : i64, tpu.core_type = #tpu.core_type<tc>} {
    %c0 = arith.constant 0 : index
    %c0_0 = arith.constant 0 : index
    %0 = vector.load %arg2[%c0, %c0_0] : memref<32x128xf32, #tpu.memory_space<vmem>>, vector<32x128xf32>
    %c0_1 = arith.constant 0 : index
    %c0_2 = arith.constant 0 : index
    %1 = vector.load %arg0[%c0_1, %c0_2] : memref<64x16xf32, #tpu.memory_space<vmem>>, vector<64x16xf32>
    %c0_3 = arith.constant 0 : index
    %c0_4 = arith.constant 0 : index
    %2 = vector.load %arg1[%c0_3, %c0_4] : memref<16x128xf32, #tpu.memory_space<vmem>>, vector<16x128xf32>
    %cst = arith.constant dense<0.000000e+00> : vector<64x128xf32>
    %3 = tpu.matmul %1, %2, %cst {dimension_numbers = #tpu.dot_dimension_numbers<[1], [0], [0], [1], [0, 0, 1, 1], [], []>} : vector<64x16xf32>, vector<16x128xf32>, vector<64x128xf32> -> vector<64x128xf32>
    %c0_5 = arith.constant 0 : index
    %c0_6 = arith.constant 0 : index
    %4 = vector.load %arg3[%c0_5, %c0_6] : memref<1x128xf32, #tpu.memory_space<vmem>>, vector<1x128xf32>
    %5 = vector.broadcast %4 : vector<1x128xf32> to vector<64x128xf32>
    %6 = arith.addf %3, %5 : vector<64x128xf32>
    %cst_7 = arith.constant 0.000000e+00 : f32
    %7 = vector.broadcast %cst_7 : f32 to vector<8x32xf32>
    %cst_8 = arith.constant 0.000000e+00 : f32
    %8 = vector.broadcast %cst_8 : f32 to vector<8x32xf32>
    %9 = vector.extract_strided_slice %6 {offsets = [0, 0], sizes = [8, 128], strides = [1, 1]} : vector<64x128xf32> to vector<8x128xf32>
    %cst_9 = arith.constant dense<0.000000e+00> : vector<8x128xf32>
    %10 = tpu.matmul %7, %0, %cst_9 {dimension_numbers = #tpu.dot_dimension_numbers<[1], [0], [0], [1], [0, 0, 1, 1], [], []>} : vector<8x32xf32>, vector<32x128xf32>, vector<8x128xf32> -> vector<8x128xf32>
    %11 = arith.addf %9, %10 : vector<8x128xf32>
    %12 = arith.negf %11 : vector<8x128xf32>
    %13 = math.exp %12 : vector<8x128xf32>
    %cst_10 = arith.constant 1.000000e+00 : f32
    %14 = vector.broadcast %cst_10 : f32 to vector<8x128xf32>
    %15 = arith.addf %14, %13 : vector<8x128xf32>
    %16 = arith.divf %14, %15 : vector<8x128xf32>
    %17 = math.tanh %11 : vector<8x128xf32>
    %18 = vector.extract_strided_slice %16 {offsets = [0, 0], sizes = [8, 32], strides = [1, 1]} : vector<8x128xf32> to vector<8x32xf32>
    %19 = vector.extract_strided_slice %16 {offsets = [0, 32], sizes = [8, 32], strides = [1, 1]} : vector<8x128xf32> to vector<8x32xf32>
    %20 = vector.extract_strided_slice %17 {offsets = [0, 64], sizes = [8, 32], strides = [1, 1]} : vector<8x128xf32> to vector<8x32xf32>
    %21 = vector.extract_strided_slice %16 {offsets = [0, 96], sizes = [8, 32], strides = [1, 1]} : vector<8x128xf32> to vector<8x32xf32>
    %22 = arith.mulf %19, %8 : vector<8x32xf32>
    %23 = arith.mulf %18, %20 : vector<8x32xf32>
    %24 = arith.addf %22, %23 : vector<8x32xf32>
    %25 = math.tanh %24 : vector<8x32xf32>
    %26 = arith.mulf %21, %25 : vector<8x32xf32>
    %27 = vector.extract_strided_slice %6 {offsets = [8, 0], sizes = [8, 128], strides = [1, 1]} : vector<64x128xf32> to vector<8x128xf32>
    %cst_11 = arith.constant dense<0.000000e+00> : vector<8x128xf32>
    %28 = tpu.matmul %26, %0, %cst_11 {dimension_numbers = #tpu.dot_dimension_numbers<[1], [0], [0], [1], [0, 0, 1, 1], [], []>} : vector<8x32xf32>, vector<32x128xf32>, vector<8x128xf32> -> vector<8x128xf32>
    %29 = arith.addf %27, %28 : vector<8x128xf32>
    %30 = arith.negf %29 : vector<8x128xf32>
    %31 = math.exp %30 : vector<8x128xf32>
    %cst_12 = arith.constant 1.000000e+00 : f32
    %32 = vector.broadcast %cst_12 : f32 to vector<8x128xf32>
    %33 = arith.addf %32, %31 : vector<8x128xf32>
    %34 = arith.divf %32, %33 : vector<8x128xf32>
    %35 = math.tanh %29 : vector<8x128xf32>
    %36 = vector.extract_strided_slice %34 {offsets = [0, 0], sizes = [8, 32], strides = [1, 1]} : vector<8x128xf32> to vector<8x32xf32>
    %37 = vector.extract_strided_slice %34 {offsets = [0, 32], sizes = [8, 32], strides = [1, 1]} : vector<8x128xf32> to vector<8x32xf32>
    %38 = vector.extract_strided_slice %35 {offsets = [0, 64], sizes = [8, 32], strides = [1, 1]} : vector<8x128xf32> to vector<8x32xf32>
    %39 = vector.extract_strided_slice %34 {offsets = [0, 96], sizes = [8, 32], strides = [1, 1]} : vector<8x128xf32> to vector<8x32xf32>
    %40 = arith.mulf %37, %24 : vector<8x32xf32>
    %41 = arith.mulf %36, %38 : vector<8x32xf32>
    %42 = arith.addf %40, %41 : vector<8x32xf32>
    %43 = math.tanh %42 : vector<8x32xf32>
    %44 = arith.mulf %39, %43 : vector<8x32xf32>
    %45 = vector.extract_strided_slice %6 {offsets = [16, 0], sizes = [8, 128], strides = [1, 1]} : vector<64x128xf32> to vector<8x128xf32>
    %cst_13 = arith.constant dense<0.000000e+00> : vector<8x128xf32>
    %46 = tpu.matmul %44, %0, %cst_13 {dimension_numbers = #tpu.dot_dimension_numbers<[1], [0], [0], [1], [0, 0, 1, 1], [], []>} : vector<8x32xf32>, vector<32x128xf32>, vector<8x128xf32> -> vector<8x128xf32>
    %47 = arith.addf %45, %46 : vector<8x128xf32>
    %48 = arith.negf %47 : vector<8x128xf32>
    %49 = math.exp %48 : vector<8x128xf32>
    %cst_14 = arith.constant 1.000000e+00 : f32
    %50 = vector.broadcast %cst_14 : f32 to vector<8x128xf32>
    %51 = arith.addf %50, %49 : vector<8x128xf32>
    %52 = arith.divf %50, %51 : vector<8x128xf32>
    %53 = math.tanh %47 : vector<8x128xf32>
    %54 = vector.extract_strided_slice %52 {offsets = [0, 0], sizes = [8, 32], strides = [1, 1]} : vector<8x128xf32> to vector<8x32xf32>
    %55 = vector.extract_strided_slice %52 {offsets = [0, 32], sizes = [8, 32], strides = [1, 1]} : vector<8x128xf32> to vector<8x32xf32>
    %56 = vector.extract_strided_slice %53 {offsets = [0, 64], sizes = [8, 32], strides = [1, 1]} : vector<8x128xf32> to vector<8x32xf32>
    %57 = vector.extract_strided_slice %52 {offsets = [0, 96], sizes = [8, 32], strides = [1, 1]} : vector<8x128xf32> to vector<8x32xf32>
    %58 = arith.mulf %55, %42 : vector<8x32xf32>
    %59 = arith.mulf %54, %56 : vector<8x32xf32>
    %60 = arith.addf %58, %59 : vector<8x32xf32>
    %61 = math.tanh %60 : vector<8x32xf32>
    %62 = arith.mulf %57, %61 : vector<8x32xf32>
    %63 = vector.extract_strided_slice %6 {offsets = [24, 0], sizes = [8, 128], strides = [1, 1]} : vector<64x128xf32> to vector<8x128xf32>
    %cst_15 = arith.constant dense<0.000000e+00> : vector<8x128xf32>
    %64 = tpu.matmul %62, %0, %cst_15 {dimension_numbers = #tpu.dot_dimension_numbers<[1], [0], [0], [1], [0, 0, 1, 1], [], []>} : vector<8x32xf32>, vector<32x128xf32>, vector<8x128xf32> -> vector<8x128xf32>
    %65 = arith.addf %63, %64 : vector<8x128xf32>
    %66 = arith.negf %65 : vector<8x128xf32>
    %67 = math.exp %66 : vector<8x128xf32>
    %cst_16 = arith.constant 1.000000e+00 : f32
    %68 = vector.broadcast %cst_16 : f32 to vector<8x128xf32>
    %69 = arith.addf %68, %67 : vector<8x128xf32>
    %70 = arith.divf %68, %69 : vector<8x128xf32>
    %71 = math.tanh %65 : vector<8x128xf32>
    %72 = vector.extract_strided_slice %70 {offsets = [0, 0], sizes = [8, 32], strides = [1, 1]} : vector<8x128xf32> to vector<8x32xf32>
    %73 = vector.extract_strided_slice %70 {offsets = [0, 32], sizes = [8, 32], strides = [1, 1]} : vector<8x128xf32> to vector<8x32xf32>
    %74 = vector.extract_strided_slice %71 {offsets = [0, 64], sizes = [8, 32], strides = [1, 1]} : vector<8x128xf32> to vector<8x32xf32>
    %75 = vector.extract_strided_slice %70 {offsets = [0, 96], sizes = [8, 32], strides = [1, 1]} : vector<8x128xf32> to vector<8x32xf32>
    %76 = arith.mulf %73, %60 : vector<8x32xf32>
    %77 = arith.mulf %72, %74 : vector<8x32xf32>
    %78 = arith.addf %76, %77 : vector<8x32xf32>
    %79 = math.tanh %78 : vector<8x32xf32>
    %80 = arith.mulf %75, %79 : vector<8x32xf32>
    %81 = vector.extract_strided_slice %6 {offsets = [32, 0], sizes = [8, 128], strides = [1, 1]} : vector<64x128xf32> to vector<8x128xf32>
    %cst_17 = arith.constant dense<0.000000e+00> : vector<8x128xf32>
    %82 = tpu.matmul %80, %0, %cst_17 {dimension_numbers = #tpu.dot_dimension_numbers<[1], [0], [0], [1], [0, 0, 1, 1], [], []>} : vector<8x32xf32>, vector<32x128xf32>, vector<8x128xf32> -> vector<8x128xf32>
    %83 = arith.addf %81, %82 : vector<8x128xf32>
    %84 = arith.negf %83 : vector<8x128xf32>
    %85 = math.exp %84 : vector<8x128xf32>
    %cst_18 = arith.constant 1.000000e+00 : f32
    %86 = vector.broadcast %cst_18 : f32 to vector<8x128xf32>
    %87 = arith.addf %86, %85 : vector<8x128xf32>
    %88 = arith.divf %86, %87 : vector<8x128xf32>
    %89 = math.tanh %83 : vector<8x128xf32>
    %90 = vector.extract_strided_slice %88 {offsets = [0, 0], sizes = [8, 32], strides = [1, 1]} : vector<8x128xf32> to vector<8x32xf32>
    %91 = vector.extract_strided_slice %88 {offsets = [0, 32], sizes = [8, 32], strides = [1, 1]} : vector<8x128xf32> to vector<8x32xf32>
    %92 = vector.extract_strided_slice %89 {offsets = [0, 64], sizes = [8, 32], strides = [1, 1]} : vector<8x128xf32> to vector<8x32xf32>
    %93 = vector.extract_strided_slice %88 {offsets = [0, 96], sizes = [8, 32], strides = [1, 1]} : vector<8x128xf32> to vector<8x32xf32>
    %94 = arith.mulf %91, %78 : vector<8x32xf32>
    %95 = arith.mulf %90, %92 : vector<8x32xf32>
    %96 = arith.addf %94, %95 : vector<8x32xf32>
    %97 = math.tanh %96 : vector<8x32xf32>
    %98 = arith.mulf %93, %97 : vector<8x32xf32>
    %99 = vector.extract_strided_slice %6 {offsets = [40, 0], sizes = [8, 128], strides = [1, 1]} : vector<64x128xf32> to vector<8x128xf32>
    %cst_19 = arith.constant dense<0.000000e+00> : vector<8x128xf32>
    %100 = tpu.matmul %98, %0, %cst_19 {dimension_numbers = #tpu.dot_dimension_numbers<[1], [0], [0], [1], [0, 0, 1, 1], [], []>} : vector<8x32xf32>, vector<32x128xf32>, vector<8x128xf32> -> vector<8x128xf32>
    %101 = arith.addf %99, %100 : vector<8x128xf32>
    %102 = arith.negf %101 : vector<8x128xf32>
    %103 = math.exp %102 : vector<8x128xf32>
    %cst_20 = arith.constant 1.000000e+00 : f32
    %104 = vector.broadcast %cst_20 : f32 to vector<8x128xf32>
    %105 = arith.addf %104, %103 : vector<8x128xf32>
    %106 = arith.divf %104, %105 : vector<8x128xf32>
    %107 = math.tanh %101 : vector<8x128xf32>
    %108 = vector.extract_strided_slice %106 {offsets = [0, 0], sizes = [8, 32], strides = [1, 1]} : vector<8x128xf32> to vector<8x32xf32>
    %109 = vector.extract_strided_slice %106 {offsets = [0, 32], sizes = [8, 32], strides = [1, 1]} : vector<8x128xf32> to vector<8x32xf32>
    %110 = vector.extract_strided_slice %107 {offsets = [0, 64], sizes = [8, 32], strides = [1, 1]} : vector<8x128xf32> to vector<8x32xf32>
    %111 = vector.extract_strided_slice %106 {offsets = [0, 96], sizes = [8, 32], strides = [1, 1]} : vector<8x128xf32> to vector<8x32xf32>
    %112 = arith.mulf %109, %96 : vector<8x32xf32>
    %113 = arith.mulf %108, %110 : vector<8x32xf32>
    %114 = arith.addf %112, %113 : vector<8x32xf32>
    %115 = math.tanh %114 : vector<8x32xf32>
    %116 = arith.mulf %111, %115 : vector<8x32xf32>
    %117 = vector.extract_strided_slice %6 {offsets = [48, 0], sizes = [8, 128], strides = [1, 1]} : vector<64x128xf32> to vector<8x128xf32>
    %cst_21 = arith.constant dense<0.000000e+00> : vector<8x128xf32>
    %118 = tpu.matmul %116, %0, %cst_21 {dimension_numbers = #tpu.dot_dimension_numbers<[1], [0], [0], [1], [0, 0, 1, 1], [], []>} : vector<8x32xf32>, vector<32x128xf32>, vector<8x128xf32> -> vector<8x128xf32>
    %119 = arith.addf %117, %118 : vector<8x128xf32>
    %120 = arith.negf %119 : vector<8x128xf32>
    %121 = math.exp %120 : vector<8x128xf32>
    %cst_22 = arith.constant 1.000000e+00 : f32
    %122 = vector.broadcast %cst_22 : f32 to vector<8x128xf32>
    %123 = arith.addf %122, %121 : vector<8x128xf32>
    %124 = arith.divf %122, %123 : vector<8x128xf32>
    %125 = math.tanh %119 : vector<8x128xf32>
    %126 = vector.extract_strided_slice %124 {offsets = [0, 0], sizes = [8, 32], strides = [1, 1]} : vector<8x128xf32> to vector<8x32xf32>
    %127 = vector.extract_strided_slice %124 {offsets = [0, 32], sizes = [8, 32], strides = [1, 1]} : vector<8x128xf32> to vector<8x32xf32>
    %128 = vector.extract_strided_slice %125 {offsets = [0, 64], sizes = [8, 32], strides = [1, 1]} : vector<8x128xf32> to vector<8x32xf32>
    %129 = vector.extract_strided_slice %124 {offsets = [0, 96], sizes = [8, 32], strides = [1, 1]} : vector<8x128xf32> to vector<8x32xf32>
    %130 = arith.mulf %127, %114 : vector<8x32xf32>
    %131 = arith.mulf %126, %128 : vector<8x32xf32>
    %132 = arith.addf %130, %131 : vector<8x32xf32>
    %133 = math.tanh %132 : vector<8x32xf32>
    %134 = arith.mulf %129, %133 : vector<8x32xf32>
    %135 = vector.extract_strided_slice %6 {offsets = [56, 0], sizes = [8, 128], strides = [1, 1]} : vector<64x128xf32> to vector<8x128xf32>
    %cst_23 = arith.constant dense<0.000000e+00> : vector<8x128xf32>
    %136 = tpu.matmul %134, %0, %cst_23 {dimension_numbers = #tpu.dot_dimension_numbers<[1], [0], [0], [1], [0, 0, 1, 1], [], []>} : vector<8x32xf32>, vector<32x128xf32>, vector<8x128xf32> -> vector<8x128xf32>
    %137 = arith.addf %135, %136 : vector<8x128xf32>
    %138 = arith.negf %137 : vector<8x128xf32>
    %139 = math.exp %138 : vector<8x128xf32>
    %cst_24 = arith.constant 1.000000e+00 : f32
    %140 = vector.broadcast %cst_24 : f32 to vector<8x128xf32>
    %141 = arith.addf %140, %139 : vector<8x128xf32>
    %142 = arith.divf %140, %141 : vector<8x128xf32>
    %143 = math.tanh %137 : vector<8x128xf32>
    %144 = vector.extract_strided_slice %142 {offsets = [0, 0], sizes = [8, 32], strides = [1, 1]} : vector<8x128xf32> to vector<8x32xf32>
    %145 = vector.extract_strided_slice %142 {offsets = [0, 32], sizes = [8, 32], strides = [1, 1]} : vector<8x128xf32> to vector<8x32xf32>
    %146 = vector.extract_strided_slice %143 {offsets = [0, 64], sizes = [8, 32], strides = [1, 1]} : vector<8x128xf32> to vector<8x32xf32>
    %147 = vector.extract_strided_slice %142 {offsets = [0, 96], sizes = [8, 32], strides = [1, 1]} : vector<8x128xf32> to vector<8x32xf32>
    %148 = arith.mulf %145, %132 : vector<8x32xf32>
    %149 = arith.mulf %144, %146 : vector<8x32xf32>
    %150 = arith.addf %148, %149 : vector<8x32xf32>
    %151 = math.tanh %150 : vector<8x32xf32>
    %152 = arith.mulf %147, %151 : vector<8x32xf32>
    %c0_25 = arith.constant 0 : index
    %c0_26 = arith.constant 0 : index
    %153 = vector.load %arg4[%c0_25, %c0_26] : memref<1x32xf32, #tpu.memory_space<vmem>>, vector<1x32xf32>
    %154 = vector.broadcast %153 : vector<1x32xf32> to vector<8x32xf32>
    %155 = arith.mulf %152, %154 : vector<8x32xf32>
    %cst_27 = arith.constant dense<0.000000e+00> : vector<8xf32>
    %156 = vector.multi_reduction <add>, %155, %cst_27 [1] : vector<8x32xf32> to vector<8xf32>
    %157 = vector.shape_cast %156 : vector<8xf32> to vector<8x1xf32>
    %c0_28 = arith.constant 0 : index
    %c0_29 = arith.constant 0 : index
    %158 = vector.load %arg5[%c0_28, %c0_29] : memref<1x1xf32, #tpu.memory_space<vmem>>, vector<1x1xf32>
    %159 = vector.broadcast %158 : vector<1x1xf32> to vector<8x1xf32>
    %160 = arith.addf %157, %159 : vector<8x1xf32>
    %161 = vector.shape_cast %160 : vector<8x1xf32> to vector<8x1xf32>
    %162 = vector.broadcast %161 : vector<8x1xf32> to vector<8x128xf32>
    %c0_30 = arith.constant 0 : index
    %c0_31 = arith.constant 0 : index
    %163 = vector.load %arg6[%c0_30, %c0_31] : memref<8x128xf32, #tpu.memory_space<vmem>>, vector<8x128xf32>
    tpu.vector_store %arg6[%c0_30, %c0_31], %162 {strides = array<i32>} : memref<8x128xf32, #tpu.memory_space<vmem>>, vector<8x128xf32>,
    return
  }
}

</mosaic_0001>

<llo_original>
// kernel: regressor_forward.1
$region0: #{regressor_forward.1}
  #allocation0 [shape = 'u32[]', space=smem, size = 0x4, offset = 0x4, fixed_abs, tag = 'smem constant byte address 0x4 - core index']
  #allocation1 [shape = 'u32[144,128]{1,0:T(1,128)}', space=vmem, size = 0x12000, scoped, tag = 'internal scratch']
  #allocation2 [shape = 'f32[1,1]{1,0:T(1,128)S(1)}', space=vmem, size = 0x200, scoped, tag = 'scoped memory for regressor_forward.1']
  %s0 = inlined_call_operand.vmem [shape: f32[64,16], index: 0, kind: input, shape index: {}]
  %s1 = inlined_call_operand.vmem [shape: f32[16,128], index: 1, kind: input, shape index: {}]
  %s2 = inlined_call_operand.vmem [shape: f32[32,128], index: 2, kind: input, shape index: {}]
  %s3 = inlined_call_operand.vmem [shape: f32[1,128], index: 3, kind: input, shape index: {}]
  %s4 = inlined_call_operand.vmem [shape: f32[1,32], index: 4, kind: input, shape index: {}]
  %s5 = inlined_call_operand.<no memory space> [shape: f32[1,1], index: 5, kind: input, shape index: {}]
  %s6 = inlined_call_operand.vmem [shape: f32[8,128], index: 6, kind: output, shape index: {}]
  %s7 = sld [smem:[#allocation0]]
  $region34: #{regressor_forward.1} parent=0
    _
  %s9 = ssub.s32 1, %s7
  %s10 = scalar_select 0, %s9, %s7
  %v11 = vstv %s5
  %12 = vst [vmem:[#allocation2] sm:$0x1] %v11
  // Predicated region
  $region2: #{regressor_forward.1} parent=0 // pred_check
    _
  $region3: #{regressor_forward.1} parent=0 // pred_check_branch
    %14 = sbr.rel (0) target = $region5
  $region4: #{regressor_forward.1} parent=0 // pred_region
    _
  $region5: #{regressor_forward.1} parent=0 // pred_fallthru
    _
  // Predicated region
  $region6: #{regressor_forward.1} parent=0 // pred_check
    _
  $region7: #{regressor_forward.1} parent=0 // pred_check_branch
    %16 = sbr.rel (0) target = $region9
  $region8: #{regressor_forward.1} parent=0 // pred_region
    _
  $region9: #{regressor_forward.1} parent=0 // pred_fallthru
    _
  // Predicated region
  $region10: #{regressor_forward.1} parent=0 // pred_check
    _
  $region11: #{regressor_forward.1} parent=0 // pred_check_branch
    %18 = sbr.rel (0) target = $region13
  $region12: #{regressor_forward.1} parent=0 // pred_region
    _
  $region13: #{regressor_forward.1} parent=0 // pred_fallthru
    _
  // Predicated region
  $region14: #{regressor_forward.1} parent=0 // pred_check
    _
  $region15: #{regressor_forward.1} parent=0 // pred_check_branch
    %20 = sbr.rel (0) target = $region17
  $region16: #{regressor_forward.1} parent=0 // pred_region
    _
  $region17: #{regressor_forward.1} parent=0 // pred_fallthru
    _
  // Predicated region
  $region18: #{regressor_forward.1} parent=0 // pred_check
    _
  $region19: #{regressor_forward.1} parent=0 // pred_check_branch
    %22 = sbr.rel (0) target = $region21
  $region20: #{regressor_forward.1} parent=0 // pred_region
    _
  $region21: #{regressor_forward.1} parent=0 // pred_fallthru
    _
  // Predicated region
  $region22: #{regressor_forward.1} parent=0 // pred_check
    _
  $region23: #{regressor_forward.1} parent=0 // pred_check_branch
    %24 = sbr.rel (0) target = $region25
  $region24: #{regressor_forward.1} parent=0 // pred_region
    _
  $region25: #{regressor_forward.1} parent=0 // pred_fallthru
    _
  %v25 = vld [vmem:[%s2] sm:$0xff]
  %v26 = vld [vmem:[%s2 + $0x8] sm:$0xff]
  %v27 = vld [vmem:[%s2 + $0x10] sm:$0xff]
  %v28 = vld [vmem:[%s2 + $0x18] sm:$0xff]
  %v29 = vld [vmem:[%s0] sm:$0xff]
  %v30 = vld [vmem:[%s0 + $0x8] sm:$0xff]
  %v31 = vld [vmem:[%s0 + $0x10] sm:$0xff]
  %v32 = vld [vmem:[%s0 + $0x18] sm:$0xff]
  %v33 = vld [vmem:[%s0 + $0x20] sm:$0xff]
  %v34 = vld [vmem:[%s0 + $0x28] sm:$0xff]
  %v35 = vld [vmem:[%s0 + $0x30] sm:$0xff]
  %v36 = vld [vmem:[%s0 + $0x38] sm:$0xff]
  %v37 = vld [vmem:[%s1] sm:$0xff]
  %v38 = vld [vmem:[%s1 + $0x8] sm:$0xff]
  %v39 = vld [vmem:[%s3] sm:$0x1]
  %v41 = vlaneseq
  %v42 = vshrl.u32 %v41, 7
  %v43 = vsub.s32 0, %v42
  %v44 = vrot.slane %v39, %v43
  %vm46 = vcmask 130048
  %v48 = vsel %vm46, %v29, 0
  %v51 = vsel %vm46, %v30, 0
  %v54 = vsel %vm46, %v31, 0
  %v57 = vsel %vm46, %v32, 0
  %v60 = vsel %vm46, %v33, 0
  %v63 = vsel %vm46, %v34, 0
  %v66 = vsel %vm46, %v35, 0
  %v69 = vsel %vm46, %v36, 0
  %71 = vmatprep.subr.mxu0 0.0
  %72 = vmatpush1.msra.mxu0 %v37
  %73 = vmatprep.subr.mxu0 0.0
  %74 = vmatpush1.msra.mxu0 %v38
  %75 = vmatprep.subr.mxu0 0.0
  %76 = vmatpush1.msra.mxu0 0.0
  %77 = vmatprep.subr.mxu0 0.0
  %78 = vmatpush1.msra.mxu0 0.0
  %79 = vmatprep.subr.mxu0 0.0
  %80 = vmatpush1.msra.mxu0 0.0
  %81 = vmatprep.subr.mxu0 0.0
  %82 = vmatpush1.msra.mxu0 0.0
  %83 = vmatprep.subr.mxu0 0.0
  %84 = vmatpush1.msra.mxu0 0.0
  %85 = vmatprep.subr.mxu0 0.0
  %86 = vmatpush1.msra.mxu0 0.0
  %87 = vmatprep.subr.mxu0 0.0
  %88 = vmatpush1.msra.mxu0 0.0
  %89 = vmatprep.subr.mxu0 0.0
  %90 = vmatpush1.msra.mxu0 0.0
  %91 = vmatprep.subr.mxu0 0.0
  %92 = vmatpush1.msra.mxu0 0.0
  %93 = vmatprep.subr.mxu0 0.0
  %94 = vmatpush1.msra.mxu0 0.0
  %95 = vmatprep.subr.mxu0 0.0
  %96 = vmatpush1.msra.mxu0 0.0
  %97 = vmatprep.subr.mxu0 0.0
  %98 = vmatpush1.msra.mxu0 0.0
  %99 = vmatprep.subr.mxu0 0.0
  %100 = vmatpush1.msra.mxu0 0.0
  %101 = vmatprep.subr.mxu0 0.0
  %102 = vmatpush1.msra.mxu0 0.0
  %103 = vmatprep.subr.mxu0 0.0
  %104 = vmatpush1.msra.mxu0 0.0
  %105 = vmatprep.subr.mxu0 0.0
  %106 = vmatpush1.msra.mxu0 0.0
  %107 = vmatprep.subr.mxu0 0.0
  %108 = vmatpush1.msra.mxu0 0.0
  %109 = vmatprep.subr.mxu0 0.0
  %110 = vmatpush1.msra.mxu0 0.0
  %111 = vmatprep.subr.mxu0 0.0
  %112 = vmatpush1.msra.mxu0 0.0
  %113 = vmatprep.subr.mxu0 0.0
  %114 = vmatpush1.msra.mxu0 0.0
  %115 = vmatprep.subr.mxu0 0.0
  %116 = vmatpush1.msra.mxu0 0.0
  %117 = vmatprep.subr.mxu0 0.0
  %118 = vmatpush1.msra.mxu0 0.0
  %119 = vmatprep.subr.mxu0 0.0
  %120 = vmatpush1.msra.mxu0 0.0
  %121 = vmatprep.subr.mxu0 0.0
  %122 = vmatpush1.msra.mxu0 0.0
  %123 = vmatprep.subr.mxu0 0.0
  %124 = vmatpush1.msra.mxu0 0.0
  %125 = vmatprep.subr.mxu0 0.0
  %126 = vmatpush1.msra.mxu0 0.0
  %127 = vmatprep.subr.mxu0 0.0
  %128 = vmatpush1.msra.mxu0 0.0
  %129 = vmatprep.subr.mxu0 0.0
  %130 = vmatpush1.msra.mxu0 0.0
  %131 = vmatprep.subr.mxu0 0.0
  %132 = vmatpush1.msra.mxu0 0.0
  %133 = vmatprep.subr.mxu0 0.0
  %134 = vmatpush1.msra.mxu0 0.0
  %135 = vmatprep.mubr.f32.mxu0 0.0
  %136 = vmatmul.mubr.f32.gmra.mrb[0].mxu0 %v48
  %v137 = vpop.f32.mrb[0].mxu0
  %v138 = vadd.f32 %v44, %v137
  %v139 = vpop.f32.mrb[0].mxu0
  %140 = vmatprep.mubr.f32.mxu0 0.0
  %141 = vmatmul.mubr.f32.gmra.mrb[0].mxu0 %v51
  %v142 = vpop.f32.mrb[0].mxu0
  %v143 = vadd.f32 %v44, %v142
  %v144 = vpop.f32.mrb[0].mxu0
  %145 = vmatprep.mubr.f32.mxu0 0.0
  %146 = vmatmul.mubr.f32.gmra.mrb[0].mxu0 %v54
  %v147 = vpop.f32.mrb[0].mxu0
  %v148 = vadd.f32 %v44, %v147
  %v149 = vpop.f32.mrb[0].mxu0
  %150 = vmatprep.mubr.f32.mxu0 0.0
  %151 = vmatmul.mubr.f32.gmra.mrb[0].mxu0 %v57
  %v152 = vpop.f32.mrb[0].mxu0
  %v153 = vadd.f32 %v44, %v152
  %v154 = vpop.f32.mrb[0].mxu0
  %155 = vmatprep.mubr.f32.mxu0 0.0
  %156 = vmatmul.mubr.f32.gmra.mrb[0].mxu0 %v60
  %v157 = vpop.f32.mrb[0].mxu0
  %v158 = vadd.f32 %v44, %v157
  %v159 = vpop.f32.mrb[0].mxu0
  %160 = vmatprep.mubr.f32.mxu0 0.0
  %161 = vmatmul.mubr.f32.gmra.mrb[0].mxu0 %v63
  %v162 = vpop.f32.mrb[0].mxu0
  %v163 = vadd.f32 %v44, %v162
  %v164 = vpop.f32.mrb[0].mxu0
  %165 = vmatprep.mubr.f32.mxu0 0.0
  %166 = vmatmul.mubr.f32.gmra.mrb[0].mxu0 %v66
  %v167 = vpop.f32.mrb[0].mxu0
  %v168 = vadd.f32 %v44, %v167
  %v169 = vpop.f32.mrb[0].mxu0
  %170 = vmatprep.mubr.f32.mxu0 0.0
  %171 = vmatmul.mubr.f32.gmra.mrb[0].mxu0 %v69
  %v172 = vpop.f32.mrb[0].mxu0
  %v173 = vadd.f32 %v44, %v172
  %v174 = vpop.f32.mrb[0].mxu0
  %175 = vdwg.mxu0
  %vm176 = vcmask 261120
  %v178 = vsel %vm176, 0.0, 0
  %180 = vmatprep.subr.mxu0 0.0
  %181 = vmatpush1.msra.mxu0 %v25
  %182 = vmatprep.subr.mxu0 0.0
  %183 = vmatpush1.msra.mxu0 %v26
  %184 = vmatprep.subr.mxu0 0.0
  %185 = vmatpush1.msra.mxu0 %v27
  %186 = vmatprep.subr.mxu0 0.0
  %187 = vmatpush1.msra.mxu0 %v28
  %188 = vmatprep.subr.mxu0 0.0
  %189 = vmatpush1.msra.mxu0 0.0
  %190 = vmatprep.subr.mxu0 0.0
  %191 = vmatpush1.msra.mxu0 0.0
  %192 = vmatprep.subr.mxu0 0.0
  %193 = vmatpush1.msra.mxu0 0.0
  %194 = vmatprep.subr.mxu0 0.0
  %195 = vmatpush1.msra.mxu0 0.0
  %196 = vmatprep.subr.mxu0 0.0
  %197 = vmatpush1.msra.mxu0 0.0
  %198 = vmatprep.subr.mxu0 0.0
  %199 = vmatpush1.msra.mxu0 0.0
  %200 = vmatprep.subr.mxu0 0.0
  %201 = vmatpush1.msra.mxu0 0.0
  %202 = vmatprep.subr.mxu0 0.0
  %203 = vmatpush1.msra.mxu0 0.0
  %204 = vmatprep.subr.mxu0 0.0
  %205 = vmatpush1.msra.mxu0 0.0
  %206 = vmatprep.subr.mxu0 0.0
  %207 = vmatpush1.msra.mxu0 0.0
  %208 = vmatprep.subr.mxu0 0.0
  %209 = vmatpush1.msra.mxu0 0.0
  %210 = vmatprep.subr.mxu0 0.0
  %211 = vmatpush1.msra.mxu0 0.0
  %212 = vmatprep.subr.mxu0 0.0
  %213 = vmatpush1.msra.mxu0 0.0
  %214 = vmatprep.subr.mxu0 0.0
  %215 = vmatpush1.msra.mxu0 0.0
  %216 = vmatprep.subr.mxu0 0.0
  %217 = vmatpush1.msra.mxu0 0.0
  %218 = vmatprep.subr.mxu0 0.0
  %219 = vmatpush1.msra.mxu0 0.0
  %220 = vmatprep.subr.mxu0 0.0
  %221 = vmatpush1.msra.mxu0 0.0
  %222 = vmatprep.subr.mxu0 0.0
  %223 = vmatpush1.msra.mxu0 0.0
  %224 = vmatprep.subr.mxu0 0.0
  %225 = vmatpush1.msra.mxu0 0.0
  %226 = vmatprep.subr.mxu0 0.0
  %227 = vmatpush1.msra.mxu0 0.0
  %228 = vmatprep.subr.mxu0 0.0
  %229 = vmatpush1.msra.mxu0 0.0
  %230 = vmatprep.subr.mxu0 0.0
  %231 = vmatpush1.msra.mxu0 0.0
  %232 = vmatprep.subr.mxu0 0.0
  %233 = vmatpush1.msra.mxu0 0.0
  %234 = vmatprep.subr.mxu0 0.0
  %235 = vmatpush1.msra.mxu0 0.0
  %236 = vmatprep.subr.mxu0 0.0
  %237 = vmatpush1.msra.mxu0 0.0
  %238 = vmatprep.subr.mxu0 0.0
  %239 = vmatpush1.msra.mxu0 0.0
  %240 = vmatprep.subr.mxu0 0.0
  %241 = vmatpush1.msra.mxu0 0.0
  %242 = vmatprep.subr.mxu0 0.0
  %243 = vmatpush1.msra.mxu0 0.0
  %244 = vmatprep.mubr.f32.mxu0 0.0
  %245 = vmatmul.mubr.f32.gmra.mrb[0].mxu0 %v178
  %v246 = vpop.f32.mrb[0].mxu0
  %v247 = vadd.f32 0.0, %v246
  %v248 = vpop.f32.mrb[0].mxu0
  %249 = vdwg.mxu0
  %v250 = vadd.f32 %v138, %v247
  %v251 = vxor.u32 %v250, 2147483648
  %v252 = vmul.f32 %v251, 1.442695
  %v253 = vpow.pop %v252
  %v254 = vadd.f32 %v253, 1.0
  %v255 = vrcp.pop %v254
  %v256 = vmul.f32 1.0, %v255
  %v257 = vtanh.pop %v250
  %v258 = vmul.f32 %v256, 0.0
  %260 = vrot.lane.b32.xlu0 %v257, 64
  %v261 = vpop.permute.xlu0 %260
  %v263 = vmul.f32 %v256, %v261
  %265 = vrot.lane.b32.xlu0 %v263, 32
  %v266 = vpop.permute.xlu0 %265
  %v268 = vadd.f32 %v258, %v266
  %v269 = vtanh.pop %v268
  %271 = vrot.lane.b32.xlu0 %v269, 64
  %v272 = vpop.permute.xlu0 %271
  %v274 = vmul.f32 %v256, %v272
  %276 = vrot.lane.b32.xlu0 %v274, 32
  %v277 = vpop.permute.xlu0 %276
  %v278 = vsel %vm176, %v277, 0
  %280 = vmatprep.subr.mxu0 0.0
  %281 = vmatpush1.msra.mxu0 %v25
  %282 = vmatprep.subr.mxu0 0.0
  %283 = vmatpush1.msra.mxu0 %v26
  %284 = vmatprep.subr.mxu0 0.0
  %285 = vmatpush1.msra.mxu0 %v27
  %286 = vmatprep.subr.mxu0 0.0
  %287 = vmatpush1.msra.mxu0 %v28
  %288 = vmatprep.subr.mxu0 0.0
  %289 = vmatpush1.msra.mxu0 0.0
  %290 = vmatprep.subr.mxu0 0.0
  %291 = vmatpush1.msra.mxu0 0.0
  %292 = vmatprep.subr.mxu0 0.0
  %293 = vmatpush1.msra.mxu0 0.0
  %294 = vmatprep.subr.mxu0 0.0
  %295 = vmatpush1.msra.mxu0 0.0
  %296 = vmatprep.subr.mxu0 0.0
  %297 = vmatpush1.msra.mxu0 0.0
  %298 = vmatprep.subr.mxu0 0.0
  %299 = vmatpush1.msra.mxu0 0.0
  %300 = vmatprep.subr.mxu0 0.0
  %301 = vmatpush1.msra.mxu0 0.0
  %302 = vmatprep.subr.mxu0 0.0
  %303 = vmatpush1.msra.mxu0 0.0
  %304 = vmatprep.subr.mxu0 0.0
  %305 = vmatpush1.msra.mxu0 0.0
  %306 = vmatprep.subr.mxu0 0.0
  %307 = vmatpush1.msra.mxu0 0.0
  %308 = vmatprep.subr.mxu0 0.0
  %309 = vmatpush1.msra.mxu0 0.0
  %310 = vmatprep.subr.mxu0 0.0
  %311 = vmatpush1.msra.mxu0 0.0
  %312 = vmatprep.subr.mxu0 0.0
  %313 = vmatpush1.msra.mxu0 0.0
  %314 = vmatprep.subr.mxu0 0.0
  %315 = vmatpush1.msra.mxu0 0.0
  %316 = vmatprep.subr.mxu0 0.0
  %317 = vmatpush1.msra.mxu0 0.0
  %318 = vmatprep.subr.mxu0 0.0
  %319 = vmatpush1.msra.mxu0 0.0
  %320 = vmatprep.subr.mxu0 0.0
  %321 = vmatpush1.msra.mxu0 0.0
  %322 = vmatprep.subr.mxu0 0.0
  %323 = vmatpush1.msra.mxu0 0.0
  %324 = vmatprep.subr.mxu0 0.0
  %325 = vmatpush1.msra.mxu0 0.0
  %326 = vmatprep.subr.mxu0 0.0
  %327 = vmatpush1.msra.mxu0 0.0
  %328 = vmatprep.subr.mxu0 0.0
  %329 = vmatpush1.msra.mxu0 0.0
  %330 = vmatprep.subr.mxu0 0.0
  %331 = vmatpush1.msra.mxu0 0.0
  %332 = vmatprep.subr.mxu0 0.0
  %333 = vmatpush1.msra.mxu0 0.0
  %334 = vmatprep.subr.mxu0 0.0
  %335 = vmatpush1.msra.mxu0 0.0
  %336 = vmatprep.subr.mxu0 0.0
  %337 = vmatpush1.msra.mxu0 0.0
  %338 = vmatprep.subr.mxu0 0.0
  %339 = vmatpush1.msra.mxu0 0.0
  %340 = vmatprep.subr.mxu0 0.0
  %341 = vmatpush1.msra.mxu0 0.0
  %342 = vmatprep.subr.mxu0 0.0
  %343 = vmatpush1.msra.mxu0 0.0
  %344 = vmatprep.mubr.f32.mxu0 0.0
  %345 = vmatmul.mubr.f32.gmra.mrb[0].mxu0 %v278
  %v346 = vpop.f32.mrb[0].mxu0
  %v347 = vadd.f32 0.0, %v346
  %v348 = vpop.f32.mrb[0].mxu0
  %349 = vdwg.mxu0
  %v350 = vadd.f32 %v143, %v347
  %v351 = vxor.u32 %v350, 2147483648
  %v352 = vmul.f32 %v351, 1.442695
  %v353 = vpow.pop %v352
  %v354 = vadd.f32 %v353, 1.0
  %v355 = vrcp.pop %v354
  %v356 = vmul.f32 1.0, %v355
  %v357 = vtanh.pop %v350
  %v358 = vmul.f32 %v356, %v268
  %360 = vrot.lane.b32.xlu0 %v357, 64
  %v361 = vpop.permute.xlu0 %360
  %v363 = vmul.f32 %v356, %v361
  %365 = vrot.lane.b32.xlu0 %v363, 32
  %v366 = vpop.permute.xlu0 %365
  %v368 = vadd.f32 %v358, %v366
  %v369 = vtanh.pop %v368
  %371 = vrot.lane.b32.xlu0 %v369, 64
  %v372 = vpop.permute.xlu0 %371
  %v374 = vmul.f32 %v356, %v372
  %376 = vrot.lane.b32.xlu0 %v374, 32
  %v377 = vpop.permute.xlu0 %376
  %v378 = vsel %vm176, %v377, 0
  %380 = vmatprep.subr.mxu0 0.0
  %381 = vmatpush1.msra.mxu0 %v25
  %382 = vmatprep.subr.mxu0 0.0
  %383 = vmatpush1.msra.mxu0 %v26
  %384 = vmatprep.subr.mxu0 0.0
  %385 = vmatpush1.msra.mxu0 %v27
  %386 = vmatprep.subr.mxu0 0.0
  %387 = vmatpush1.msra.mxu0 %v28
  %388 = vmatprep.subr.mxu0 0.0
  %389 = vmatpush1.msra.mxu0 0.0
  %390 = vmatprep.subr.mxu0 0.0
  %391 = vmatpush1.msra.mxu0 0.0
  %392 = vmatprep.subr.mxu0 0.0
  %393 = vmatpush1.msra.mxu0 0.0
  %394 = vmatprep.subr.mxu0 0.0
  %395 = vmatpush1.msra.mxu0 0.0
  %396 = vmatprep.subr.mxu0 0.0
  %397 = vmatpush1.msra.mxu0 0.0
  %398 = vmatprep.subr.mxu0 0.0
  %399 = vmatpush1.msra.mxu0 0.0
  %400 = vmatprep.subr.mxu0 0.0
  %401 = vmatpush1.msra.mxu0 0.0
  %402 = vmatprep.subr.mxu0 0.0
  %403 = vmatpush1.msra.mxu0 0.0
  %404 = vmatprep.subr.mxu0 0.0
  %405 = vmatpush1.msra.mxu0 0.0
  %406 = vmatprep.subr.mxu0 0.0
  %407 = vmatpush1.msra.mxu0 0.0
  %408 = vmatprep.subr.mxu0 0.0
  %409 = vmatpush1.msra.mxu0 0.0
  %410 = vmatprep.subr.mxu0 0.0
  %411 = vmatpush1.msra.mxu0 0.0
  %412 = vmatprep.subr.mxu0 0.0
  %413 = vmatpush1.msra.mxu0 0.0
  %414 = vmatprep.subr.mxu0 0.0
  %415 = vmatpush1.msra.mxu0 0.0
  %416 = vmatprep.subr.mxu0 0.0
  %417 = vmatpush1.msra.mxu0 0.0
  %418 = vmatprep.subr.mxu0 0.0
  %419 = vmatpush1.msra.mxu0 0.0
  %420 = vmatprep.subr.mxu0 0.0
  %421 = vmatpush1.msra.mxu0 0.0
  %422 = vmatprep.subr.mxu0 0.0
  %423 = vmatpush1.msra.mxu0 0.0
  %424 = vmatprep.subr.mxu0 0.0
  %425 = vmatpush1.msra.mxu0 0.0
  %426 = vmatprep.subr.mxu0 0.0
  %427 = vmatpush1.msra.mxu0 0.0
  %428 = vmatprep.subr.mxu0 0.0
  %429 = vmatpush1.msra.mxu0 0.0
  %430 = vmatprep.subr.mxu0 0.0
  %431 = vmatpush1.msra.mxu0 0.0
  %432 = vmatprep.subr.mxu0 0.0
  %433 = vmatpush1.msra.mxu0 0.0
  %434 = vmatprep.subr.mxu0 0.0
  %435 = vmatpush1.msra.mxu0 0.0
  %436 = vmatprep.subr.mxu0 0.0
  %437 = vmatpush1.msra.mxu0 0.0
  %438 = vmatprep.subr.mxu0 0.0
  %439 = vmatpush1.msra.mxu0 0.0
  %440 = vmatprep.subr.mxu0 0.0
  %441 = vmatpush1.msra.mxu0 0.0
  %442 = vmatprep.subr.mxu0 0.0
  %443 = vmatpush1.msra.mxu0 0.0
  %444 = vmatprep.mubr.f32.mxu0 0.0
  %445 = vmatmul.mubr.f32.gmra.mrb[0].mxu0 %v378
  %v446 = vpop.f32.mrb[0].mxu0
  %v447 = vadd.f32 0.0, %v446
  %v448 = vpop.f32.mrb[0].mxu0
  %449 = vdwg.mxu0
  %v450 = vadd.f32 %v148, %v447
  %v451 = vxor.u32 %v450, 2147483648
  %v452 = vmul.f32 %v451, 1.442695
  %v453 = vpow.pop %v452
  %v454 = vadd.f32 %v453, 1.0
  %v455 = vrcp.pop %v454
  %v456 = vmul.f32 1.0, %v455
  %v457 = vtanh.pop %v450
  %v458 = vmul.f32 %v456, %v368
  %460 = vrot.lane.b32.xlu0 %v457, 64
  %v461 = vpop.permute.xlu0 %460
  %v463 = vmul.f32 %v456, %v461
  %465 = vrot.lane.b32.xlu0 %v463, 32
  %v466 = vpop.permute.xlu0 %465
  %v468 = vadd.f32 %v458, %v466
  %v469 = vtanh.pop %v468
  %471 = vrot.lane.b32.xlu0 %v469, 64
  %v472 = vpop.permute.xlu0 %471
  %v474 = vmul.f32 %v456, %v472
  %476 = vrot.lane.b32.xlu0 %v474, 32
  %v477 = vpop.permute.xlu0 %476
  %v478 = vsel %vm176, %v477, 0
  %480 = vmatprep.subr.mxu0 0.0
  %481 = vmatpush1.msra.mxu0 %v25
  %482 = vmatprep.subr.mxu0 0.0
  %483 = vmatpush1.msra.mxu0 %v26
  %484 = vmatprep.subr.mxu0 0.0
  %485 = vmatpush1.msra.mxu0 %v27
  %486 = vmatprep.subr.mxu0 0.0
  %487 = vmatpush1.msra.mxu0 %v28
  %488 = vmatprep.subr.mxu0 0.0
  %489 = vmatpush1.msra.mxu0 0.0
  %490 = vmatprep.subr.mxu0 0.0
  %491 = vmatpush1.msra.mxu0 0.0
  %492 = vmatprep.subr.mxu0 0.0
  %493 = vmatpush1.msra.mxu0 0.0
  %494 = vmatprep.subr.mxu0 0.0
  %495 = vmatpush1.msra.mxu0 0.0
  %496 = vmatprep.subr.mxu0 0.0
  %497 = vmatpush1.msra.mxu0 0.0
  %498 = vmatprep.subr.mxu0 0.0
  %499 = vmatpush1.msra.mxu0 0.0
  %500 = vmatprep.subr.mxu0 0.0
  %501 = vmatpush1.msra.mxu0 0.0
  %502 = vmatprep.subr.mxu0 0.0
  %503 = vmatpush1.msra.mxu0 0.0
  %504 = vmatprep.subr.mxu0 0.0
  %505 = vmatpush1.msra.mxu0 0.0
  %506 = vmatprep.subr.mxu0 0.0
  %507 = vmatpush1.msra.mxu0 0.0
  %508 = vmatprep.subr.mxu0 0.0
  %509 = vmatpush1.msra.mxu0 0.0
  %510 = vmatprep.subr.mxu0 0.0
  %511 = vmatpush1.msra.mxu0 0.0
  %512 = vmatprep.subr.mxu0 0.0
  %513 = vmatpush1.msra.mxu0 0.0
  %514 = vmatprep.subr.mxu0 0.0
  %515 = vmatpush1.msra.mxu0 0.0
  %516 = vmatprep.subr.mxu0 0.0
  %517 = vmatpush1.msra.mxu0 0.0
  %518 = vmatprep.subr.mxu0 0.0
  %519 = vmatpush1.msra.mxu0 0.0
  %520 = vmatprep.subr.mxu0 0.0
  %521 = vmatpush1.msra.mxu0 0.0
  %522 = vmatprep.subr.mxu0 0.0
  %523 = vmatpush1.msra.mxu0 0.0
  %524 = vmatprep.subr.mxu0 0.0
  %525 = vmatpush1.msra.mxu0 0.0
  %526 = vmatprep.subr.mxu0 0.0
  %527 = vmatpush1.msra.mxu0 0.0
  %528 = vmatprep.subr.mxu0 0.0
  %529 = vmatpush1.msra.mxu0 0.0
  %530 = vmatprep.subr.mxu0 0.0
  %531 = vmatpush1.msra.mxu0 0.0
  %532 = vmatprep.subr.mxu0 0.0
  %533 = vmatpush1.msra.mxu0 0.0
  %534 = vmatprep.subr.mxu0 0.0
  %535 = vmatpush1.msra.mxu0 0.0
  %536 = vmatprep.subr.mxu0 0.0
  %537 = vmatpush1.msra.mxu0 0.0
  %538 = vmatprep.subr.mxu0 0.0
  %539 = vmatpush1.msra.mxu0 0.0
  %540 = vmatprep.subr.mxu0 0.0
  %541 = vmatpush1.msra.mxu0 0.0
  %542 = vmatprep.subr.mxu0 0.0
  %543 = vmatpush1.msra.mxu0 0.0
  %544 = vmatprep.mubr.f32.mxu0 0.0
  %545 = vmatmul.mubr.f32.gmra.mrb[0].mxu0 %v478
  %v546 = vpop.f32.mrb[0].mxu0
  %v547 = vadd.f32 0.0, %v546
  %v548 = vpop.f32.mrb[0].mxu0
  %549 = vdwg.mxu0
  %v550 = vadd.f32 %v153, %v547
  %v551 = vxor.u32 %v550, 2147483648
  %v552 = vmul.f32 %v551, 1.442695
  %v553 = vpow.pop %v552
  %v554 = vadd.f32 %v553, 1.0
  %v555 = vrcp.pop %v554
  %v556 = vmul.f32 1.0, %v555
  %v557 = vtanh.pop %v550
  %v558 = vmul.f32 %v556, %v468
  %560 = vrot.lane.b32.xlu0 %v557, 64
  %v561 = vpop.permute.xlu0 %560
  %v563 = vmul.f32 %v556, %v561
  %565 = vrot.lane.b32.xlu0 %v563, 32
  %v566 = vpop.permute.xlu0 %565
  %v568 = vadd.f32 %v558, %v566
  %v569 = vtanh.pop %v568
  %571 = vrot.lane.b32.xlu0 %v569, 64
  %v572 = vpop.permute.xlu0 %571
  %v574 = vmul.f32 %v556, %v572
  %576 = vrot.lane.b32.xlu0 %v574, 32
  %v577 = vpop.permute.xlu0 %576
  %v578 = vsel %vm176, %v577, 0
  %580 = vmatprep.subr.mxu0 0.0
  %581 = vmatpush1.msra.mxu0 %v25
  %582 = vmatprep.subr.mxu0 0.0
  %583 = vmatpush1.msra.mxu0 %v26
  %584 = vmatprep.subr.mxu0 0.0
  %585 = vmatpush1.msra.mxu0 %v27
  %586 = vmatprep.subr.mxu0 0.0
  %587 = vmatpush1.msra.mxu0 %v28
  %588 = vmatprep.subr.mxu0 0.0
  %589 = vmatpush1.msra.mxu0 0.0
  %590 = vmatprep.subr.mxu0 0.0
  %591 = vmatpush1.msra.mxu0 0.0
  %592 = vmatprep.subr.mxu0 0.0
  %593 = vmatpush1.msra.mxu0 0.0
  %594 = vmatprep.subr.mxu0 0.0
  %595 = vmatpush1.msra.mxu0 0.0
  %596 = vmatprep.subr.mxu0 0.0
  %597 = vmatpush1.msra.mxu0 0.0
  %598 = vmatprep.subr.mxu0 0.0
  %599 = vmatpush1.msra.mxu0 0.0
  %600 = vmatprep.subr.mxu0 0.0
  %601 = vmatpush1.msra.mxu0 0.0
  %602 = vmatprep.subr.mxu0 0.0
  %603 = vmatpush1.msra.mxu0 0.0
  %604 = vmatprep.subr.mxu0 0.0
  %605 = vmatpush1.msra.mxu0 0.0
  %606 = vmatprep.subr.mxu0 0.0
  %607 = vmatpush1.msra.mxu0 0.0
  %608 = vmatprep.subr.mxu0 0.0
  %609 = vmatpush1.msra.mxu0 0.0
  %610 = vmatprep.subr.mxu0 0.0
  %611 = vmatpush1.msra.mxu0 0.0
  %612 = vmatprep.subr.mxu0 0.0
  %613 = vmatpush1.msra.mxu0 0.0
  %614 = vmatprep.subr.mxu0 0.0
  %615 = vmatpush1.msra.mxu0 0.0
  %616 = vmatprep.subr.mxu0 0.0
  %617 = vmatpush1.msra.mxu0 0.0
  %618 = vmatprep.subr.mxu0 0.0
  %619 = vmatpush1.msra.mxu0 0.0
  %620 = vmatprep.subr.mxu0 0.0
  %621 = vmatpush1.msra.mxu0 0.0
  %622 = vmatprep.subr.mxu0 0.0
  %623 = vmatpush1.msra.mxu0 0.0
  %624 = vmatprep.subr.mxu0 0.0
  %625 = vmatpush1.msra.mxu0 0.0
  %626 = vmatprep.subr.mxu0 0.0
  %627 = vmatpush1.msra.mxu0 0.0
  %628 = vmatprep.subr.mxu0 0.0
  %629 = vmatpush1.msra.mxu0 0.0
  %630 = vmatprep.subr.mxu0 0.0
  %631 = vmatpush1.msra.mxu0 0.0
  %632 = vmatprep.subr.mxu0 0.0
  %633 = vmatpush1.msra.mxu0 0.0
  %634 = vmatprep.subr.mxu0 0.0
  %635 = vmatpush1.msra.mxu0 0.0
  %636 = vmatprep.subr.mxu0 0.0
  %637 = vmatpush1.msra.mxu0 0.0
  %638 = vmatprep.subr.mxu0 0.0
  %639 = vmatpush1.msra.mxu0 0.0
  %640 = vmatprep.subr.mxu0 0.0
  %641 = vmatpush1.msra.mxu0 0.0
  %642 = vmatprep.subr.mxu0 0.0
  %643 = vmatpush1.msra.mxu0 0.0
  %644 = vmatprep.mubr.f32.mxu0 0.0
  %645 = vmatmul.mubr.f32.gmra.mrb[0].mxu0 %v578
  %v646 = vpop.f32.mrb[0].mxu0
  %v647 = vadd.f32 0.0, %v646
  %v648 = vpop.f32.mrb[0].mxu0
  %649 = vdwg.mxu0
  %v650 = vadd.f32 %v158, %v647
  %v651 = vxor.u32 %v650, 2147483648
  %v652 = vmul.f32 %v651, 1.442695
  %v653 = vpow.pop %v652
  %v654 = vadd.f32 %v653, 1.0
  %v655 = vrcp.pop %v654
  %v656 = vmul.f32 1.0, %v655
  %v657 = vtanh.pop %v650
  %v658 = vmul.f32 %v656, %v568
  %660 = vrot.lane.b32.xlu0 %v657, 64
  %v661 = vpop.permute.xlu0 %660
  %v663 = vmul.f32 %v656, %v661
  %665 = vrot.lane.b32.xlu0 %v663, 32
  %v666 = vpop.permute.xlu0 %665
  %v668 = vadd.f32 %v658, %v666
  %v669 = vtanh.pop %v668
  %671 = vrot.lane.b32.xlu0 %v669, 64
  %v672 = vpop.permute.xlu0 %671
  %v674 = vmul.f32 %v656, %v672
  %676 = vrot.lane.b32.xlu0 %v674, 32
  %v677 = vpop.permute.xlu0 %676
  %v678 = vsel %vm176, %v677, 0
  %680 = vmatprep.subr.mxu0 0.0
  %681 = vmatpush1.msra.mxu0 %v25
  %682 = vmatprep.subr.mxu0 0.0
  %683 = vmatpush1.msra.mxu0 %v26
  %684 = vmatprep.subr.mxu0 0.0
  %685 = vmatpush1.msra.mxu0 %v27
  %686 = vmatprep.subr.mxu0 0.0
  %687 = vmatpush1.msra.mxu0 %v28
  %688 = vmatprep.subr.mxu0 0.0
  %689 = vmatpush1.msra.mxu0 0.0
  %690 = vmatprep.subr.mxu0 0.0
  %691 = vmatpush1.msra.mxu0 0.0
  %692 = vmatprep.subr.mxu0 0.0
  %693 = vmatpush1.msra.mxu0 0.0
  %694 = vmatprep.subr.mxu0 0.0
  %695 = vmatpush1.msra.mxu0 0.0
  %696 = vmatprep.subr.mxu0 0.0
  %697 = vmatpush1.msra.mxu0 0.0
  %698 = vmatprep.subr.mxu0 0.0
  %699 = vmatpush1.msra.mxu0 0.0
  %700 = vmatprep.subr.mxu0 0.0
  %701 = vmatpush1.msra.mxu0 0.0
  %702 = vmatprep.subr.mxu0 0.0
  %703 = vmatpush1.msra.mxu0 0.0
  %704 = vmatprep.subr.mxu0 0.0
  %705 = vmatpush1.msra.mxu0 0.0
  %706 = vmatprep.subr.mxu0 0.0
  %707 = vmatpush1.msra.mxu0 0.0
  %708 = vmatprep.subr.mxu0 0.0
  %709 = vmatpush1.msra.mxu0 0.0
  %710 = vmatprep.subr.mxu0 0.0
  %711 = vmatpush1.msra.mxu0 0.0
  %712 = vmatprep.subr.mxu0 0.0
  %713 = vmatpush1.msra.mxu0 0.0
  %714 = vmatprep.subr.mxu0 0.0
  %715 = vmatpush1.msra.mxu0 0.0
  %716 = vmatprep.subr.mxu0 0.0
  %717 = vmatpush1.msra.mxu0 0.0
  %718 = vmatprep.subr.mxu0 0.0
  %719 = vmatpush1.msra.mxu0 0.0
  %720 = vmatprep.subr.mxu0 0.0
  %721 = vmatpush1.msra.mxu0 0.0
  %722 = vmatprep.subr.mxu0 0.0
  %723 = vmatpush1.msra.mxu0 0.0
  %724 = vmatprep.subr.mxu0 0.0
  %725 = vmatpush1.msra.mxu0 0.0
  %726 = vmatprep.subr.mxu0 0.0
  %727 = vmatpush1.msra.mxu0 0.0
  %728 = vmatprep.subr.mxu0 0.0
  %729 = vmatpush1.msra.mxu0 0.0
  %730 = vmatprep.subr.mxu0 0.0
  %731 = vmatpush1.msra.mxu0 0.0
  %732 = vmatprep.subr.mxu0 0.0
  %733 = vmatpush1.msra.mxu0 0.0
  %734 = vmatprep.subr.mxu0 0.0
  %735 = vmatpush1.msra.mxu0 0.0
  %736 = vmatprep.subr.mxu0 0.0
  %737 = vmatpush1.msra.mxu0 0.0
  %738 = vmatprep.subr.mxu0 0.0
  %739 = vmatpush1.msra.mxu0 0.0
  %740 = vmatprep.subr.mxu0 0.0
  %741 = vmatpush1.msra.mxu0 0.0
  %742 = vmatprep.subr.mxu0 0.0
  %743 = vmatpush1.msra.mxu0 0.0
  %744 = vmatprep.mubr.f32.mxu0 0.0
  %745 = vmatmul.mubr.f32.gmra.mrb[0].mxu0 %v678
  %v746 = vpop.f32.mrb[0].mxu0
  %v747 = vadd.f32 0.0, %v746
  %v748 = vpop.f32.mrb[0].mxu0
  %749 = vdwg.mxu0
  %v750 = vadd.f32 %v163, %v747
  %v751 = vxor.u32 %v750, 2147483648
  %v752 = vmul.f32 %v751, 1.442695
  %v753 = vpow.pop %v752
  %v754 = vadd.f32 %v753, 1.0
  %v755 = vrcp.pop %v754
  %v756 = vmul.f32 1.0, %v755
  %v757 = vtanh.pop %v750
  %v758 = vmul.f32 %v756, %v668
  %760 = vrot.lane.b32.xlu0 %v757, 64
  %v761 = vpop.permute.xlu0 %760
  %v763 = vmul.f32 %v756, %v761
  %765 = vrot.lane.b32.xlu0 %v763, 32
  %v766 = vpop.permute.xlu0 %765
  %v768 = vadd.f32 %v758, %v766
  %v769 = vtanh.pop %v768
  %771 = vrot.lane.b32.xlu0 %v769, 64
  %v772 = vpop.permute.xlu0 %771
  %v774 = vmul.f32 %v756, %v772
  %776 = vrot.lane.b32.xlu0 %v774, 32
  %v777 = vpop.permute.xlu0 %776
  %v778 = vsel %vm176, %v777, 0
  %780 = vmatprep.subr.mxu0 0.0
  %781 = vmatpush1.msra.mxu0 %v25
  %782 = vmatprep.subr.mxu0 0.0
  %783 = vmatpush1.msra.mxu0 %v26
  %784 = vmatprep.subr.mxu0 0.0
  %785 = vmatpush1.msra.mxu0 %v27
  %786 = vmatprep.subr.mxu0 0.0
  %787 = vmatpush1.msra.mxu0 %v28
  %788 = vmatprep.subr.mxu0 0.0
  %789 = vmatpush1.msra.mxu0 0.0
  %790 = vmatprep.subr.mxu0 0.0
  %791 = vmatpush1.msra.mxu0 0.0
  %792 = vmatprep.subr.mxu0 0.0
  %793 = vmatpush1.msra.mxu0 0.0
  %794 = vmatprep.subr.mxu0 0.0
  %795 = vmatpush1.msra.mxu0 0.0
  %796 = vmatprep.subr.mxu0 0.0
  %797 = vmatpush1.msra.mxu0 0.0
  %798 = vmatprep.subr.mxu0 0.0
  %799 = vmatpush1.msra.mxu0 0.0
  %800 = vmatprep.subr.mxu0 0.0
  %801 = vmatpush1.msra.mxu0 0.0
  %802 = vmatprep.subr.mxu0 0.0
  %803 = vmatpush1.msra.mxu0 0.0
  %804 = vmatprep.subr.mxu0 0.0
  %805 = vmatpush1.msra.mxu0 0.0
  %806 = vmatprep.subr.mxu0 0.0
  %807 = vmatpush1.msra.mxu0 0.0
  %808 = vmatprep.subr.mxu0 0.0
  %809 = vmatpush1.msra.mxu0 0.0
  %810 = vmatprep.subr.mxu0 0.0
  %811 = vmatpush1.msra.mxu0 0.0
  %812 = vmatprep.subr.mxu0 0.0
  %813 = vmatpush1.msra.mxu0 0.0
  %814 = vmatprep.subr.mxu0 0.0
  %815 = vmatpush1.msra.mxu0 0.0
  %816 = vmatprep.subr.mxu0 0.0
  %817 = vmatpush1.msra.mxu0 0.0
  %818 = vmatprep.subr.mxu0 0.0
  %819 = vmatpush1.msra.mxu0 0.0
  %820 = vmatprep.subr.mxu0 0.0
  %821 = vmatpush1.msra.mxu0 0.0
  %822 = vmatprep.subr.mxu0 0.0
  %823 = vmatpush1.msra.mxu0 0.0
  %824 = vmatprep.subr.mxu0 0.0
  %825 = vmatpush1.msra.mxu0 0.0
  %826 = vmatprep.subr.mxu0 0.0
  %827 = vmatpush1.msra.mxu0 0.0
  %828 = vmatprep.subr.mxu0 0.0
  %829 = vmatpush1.msra.mxu0 0.0
  %830 = vmatprep.subr.mxu0 0.0
  %831 = vmatpush1.msra.mxu0 0.0
  %832 = vmatprep.subr.mxu0 0.0
  %833 = vmatpush1.msra.mxu0 0.0
  %834 = vmatprep.subr.mxu0 0.0
  %835 = vmatpush1.msra.mxu0 0.0
  %836 = vmatprep.subr.mxu0 0.0
  %837 = vmatpush1.msra.mxu0 0.0
  %838 = vmatprep.subr.mxu0 0.0
  %839 = vmatpush1.msra.mxu0 0.0
  %840 = vmatprep.subr.mxu0 0.0
  %841 = vmatpush1.msra.mxu0 0.0
  %842 = vmatprep.subr.mxu0 0.0
  %843 = vmatpush1.msra.mxu0 0.0
  %844 = vmatprep.mubr.f32.mxu0 0.0
  %845 = vmatmul.mubr.f32.gmra.mrb[0].mxu0 %v778
  %v846 = vpop.f32.mrb[0].mxu0
  %v847 = vadd.f32 0.0, %v846
  %v848 = vpop.f32.mrb[0].mxu0
  %849 = vdwg.mxu0
  %v850 = vadd.f32 %v168, %v847
  %v851 = vxor.u32 %v850, 2147483648
  %v852 = vmul.f32 %v851, 1.442695
  %v853 = vpow.pop %v852
  %v854 = vadd.f32 %v853, 1.0
  %v855 = vrcp.pop %v854
  %v856 = vmul.f32 1.0, %v855
  %v857 = vtanh.pop %v850
  %v858 = vmul.f32 %v856, %v768
  %860 = vrot.lane.b32.xlu0 %v857, 64
  %v861 = vpop.permute.xlu0 %860
  %v863 = vmul.f32 %v856, %v861
  %865 = vrot.lane.b32.xlu0 %v863, 32
  %v866 = vpop.permute.xlu0 %865
  %v868 = vadd.f32 %v858, %v866
  %v869 = vtanh.pop %v868
  %871 = vrot.lane.b32.xlu0 %v869, 64
  %v872 = vpop.permute.xlu0 %871
  %v874 = vmul.f32 %v856, %v872
  %876 = vrot.lane.b32.xlu0 %v874, 32
  %v877 = vpop.permute.xlu0 %876
  %v878 = vsel %vm176, %v877, 0
  %880 = vmatprep.subr.mxu0 0.0
  %881 = vmatpush1.msra.mxu0 %v25
  %882 = vmatprep.subr.mxu0 0.0
  %883 = vmatpush1.msra.mxu0 %v26
  %884 = vmatprep.subr.mxu0 0.0
  %885 = vmatpush1.msra.mxu0 %v27
  %886 = vmatprep.subr.mxu0 0.0
  %887 = vmatpush1.msra.mxu0 %v28
  %888 = vmatprep.subr.mxu0 0.0
  %889 = vmatpush1.msra.mxu0 0.0
  %890 = vmatprep.subr.mxu0 0.0
  %891 = vmatpush1.msra.mxu0 0.0
  %892 = vmatprep.subr.mxu0 0.0
  %893 = vmatpush1.msra.mxu0 0.0
  %894 = vmatprep.subr.mxu0 0.0
  %895 = vmatpush1.msra.mxu0 0.0
  %896 = vmatprep.subr.mxu0 0.0
  %897 = vmatpush1.msra.mxu0 0.0
  %898 = vmatprep.subr.mxu0 0.0
  %899 = vmatpush1.msra.mxu0 0.0
  %900 = vmatprep.subr.mxu0 0.0
  %901 = vmatpush1.msra.mxu0 0.0
  %902 = vmatprep.subr.mxu0 0.0
  %903 = vmatpush1.msra.mxu0 0.0
  %904 = vmatprep.subr.mxu0 0.0
  %905 = vmatpush1.msra.mxu0 0.0
  %906 = vmatprep.subr.mxu0 0.0
  %907 = vmatpush1.msra.mxu0 0.0
  %908 = vmatprep.subr.mxu0 0.0
  %909 = vmatpush1.msra.mxu0 0.0
  %910 = vmatprep.subr.mxu0 0.0
  %911 = vmatpush1.msra.mxu0 0.0
  %912 = vmatprep.subr.mxu0 0.0
  %913 = vmatpush1.msra.mxu0 0.0
  %914 = vmatprep.subr.mxu0 0.0
  %915 = vmatpush1.msra.mxu0 0.0
  %916 = vmatprep.subr.mxu0 0.0
  %917 = vmatpush1.msra.mxu0 0.0
  %918 = vmatprep.subr.mxu0 0.0
  %919 = vmatpush1.msra.mxu0 0.0
  %920 = vmatprep.subr.mxu0 0.0
  %921 = vmatpush1.msra.mxu0 0.0
  %922 = vmatprep.subr.mxu0 0.0
  %923 = vmatpush1.msra.mxu0 0.0
  %924 = vmatprep.subr.mxu0 0.0
  %925 = vmatpush1.msra.mxu0 0.0
  %926 = vmatprep.subr.mxu0 0.0
  %927 = vmatpush1.msra.mxu0 0.0
  %928 = vmatprep.subr.mxu0 0.0
  %929 = vmatpush1.msra.mxu0 0.0
  %930 = vmatprep.subr.mxu0 0.0
  %931 = vmatpush1.msra.mxu0 0.0
  %932 = vmatprep.subr.mxu0 0.0
  %933 = vmatpush1.msra.mxu0 0.0
  %934 = vmatprep.subr.mxu0 0.0
  %935 = vmatpush1.msra.mxu0 0.0
  %936 = vmatprep.subr.mxu0 0.0
  %937 = vmatpush1.msra.mxu0 0.0
  %938 = vmatprep.subr.mxu0 0.0
  %939 = vmatpush1.msra.mxu0 0.0
  %940 = vmatprep.subr.mxu0 0.0
  %941 = vmatpush1.msra.mxu0 0.0
  %942 = vmatprep.subr.mxu0 0.0
  %943 = vmatpush1.msra.mxu0 0.0
  %944 = vmatprep.mubr.f32.mxu0 0.0
  %945 = vmatmul.mubr.f32.gmra.mrb[0].mxu0 %v878
  %v946 = vpop.f32.mrb[0].mxu0
  %v947 = vadd.f32 0.0, %v946
  %v948 = vpop.f32.mrb[0].mxu0
  %949 = vdwg.mxu0
  %v950 = vadd.f32 %v173, %v947
  %v951 = vxor.u32 %v950, 2147483648
  %v952 = vmul.f32 %v951, 1.442695
  %v953 = vpow.pop %v952
  %v954 = vadd.f32 %v953, 1.0
  %v955 = vrcp.pop %v954
  %v956 = vmul.f32 1.0, %v955
  %v957 = vtanh.pop %v950
  %v958 = vmul.f32 %v956, %v868
  %960 = vrot.lane.b32.xlu0 %v957, 64
  %v961 = vpop.permute.xlu0 %960
  %v963 = vmul.f32 %v956, %v961
  %965 = vrot.lane.b32.xlu0 %v963, 32
  %v966 = vpop.permute.xlu0 %965
  %v968 = vadd.f32 %v958, %v966
  %v969 = vtanh.pop %v968
  %971 = vrot.lane.b32.xlu0 %v969, 64
  %v972 = vpop.permute.xlu0 %971
  %v974 = vmul.f32 %v956, %v972
  %v975 = vld [vmem:[%s4] sm:$0x1]
  %v977 = vlaneseq
  %v978 = vshrl.u32 %v977, 7
  %v979 = vsub.s32 0, %v978
  %v980 = vrot.slane %v975, %v979
  %981 = vrot.lane.b32.xlu0 %v980, 96
  %v982 = vpop.permute.xlu0 %981
  %v984 = vmul.f32 %v974, %v982
  %986 = vrot.lane.b32.xlu0 %v984, 32
  %v987 = vpop.permute.xlu0 %986
  %v989 = vsel %vm176, %v987, 0.0
  %990 = vadd.xlane.f32.xlu0 %v989
  %v991 = vpop.xlane.xlu0 %990
  %v992 = vld [vmem:[#allocation2] sm:$0x1]
  %v994 = vlaneseq
  %v995 = vshrl.u32 %v994, 7
  %v996 = vsub.s32 0, %v995
  %v997 = vrot.slane %v992, %v996
  %v999 = vadd.f32 %v991, %v997
  %1001 = vset.pattern.permute.xlu0 0
  %1002 = vperm.xlu0 %1001, %v999
  %v1003 = vpop.permute.xlu0 %1002
  %1005 = vst [vmem:[%s6] sm:$0xff] %v1003
  // Predicated region
  $region26: #{regressor_forward.1} parent=0 // pred_check
    _
  $region27: #{regressor_forward.1} parent=0 // pred_check_branch
    %1007 = sbr.rel (0) target = $region29
  $region28: #{regressor_forward.1} parent=0 // pred_region
    _
  $region29: #{regressor_forward.1} parent=0 // pred_fallthru
    _
  // Predicated region
  $region30: #{regressor_forward.1} parent=0 // pred_check
    _
  $region31: #{regressor_forward.1} parent=0 // pred_check_branch
    %1009 = sbr.rel (0) target = $region33
  $region32: #{regressor_forward.1} parent=0 // pred_region
    _
  $region33: #{regressor_forward.1} parent=0 // pred_fallthru
    _

</llo_original>
